<compile_context>
chip_gen: v7x
topology: tpu7x:2x2x1
jax: 0.10.0
libtpu: 0.0.40
codegen_flags: <defaults>
</compile_context>

<pallas_src>
import functools

import jax
import jax.numpy as jnp
from jax.experimental import pallas as pl
from jax.experimental.pallas import tpu as pltpu

_LANE = 128
_MAX_ROW_TILE = 2048   # input block (2048,128): 1 MiB f32; mult of 8/16/32/256
_OUT_ROWS = 256        # resident accumulator rows (multiple of 8)


def _stable_focal_terms(s, t, *, approx_recip):
    """Per-element focal loss from s = (2t-1)*x; overflow-safe for any s."""
    u = jnp.exp(-jnp.abs(s))                                   # (0, 1], EUP
    one_plus_u = 1.0 + u
    neg_log_pt = jnp.maximum(-s, 0.0) + jnp.log(one_plus_u)    # = -log(sigmoid(s))
    if approx_recip:
        inv = pl.reciprocal(one_plus_u, approx=True)           # EUP, ~1e-3 rel err
    else:
        inv = 1.0 / one_plus_u                                 # pure-JAX path
    one_minus_pt = jnp.where(s >= 0.0, u, 1.0) * inv           # = sigmoid(-s)
    alpha = 0.2 + 0.6 * t                                      # 0.2 / 0.8
    return alpha * (one_minus_pt * one_minus_pt) * neg_log_pt


def _focal_kernel(x_ref, t_ref, o_ref, *, out_rows, n_blocks, bpc,
                  edge_valid_rows, has_overhang):
    c = pl.program_id(0)            # megacore split ("parallel")
    j = pl.program_id(1)            # block index within this core ("arbitrary")
    blk = c * bpc + j

    @pl.when(j == 0)
    def _init():
        o_ref[...] = jnp.zeros_like(o_ref)

    x = x_ref[...].astype(jnp.float32)        # (row_tile, 128) logits
    t = t_ref[...].astype(jnp.float32)        # (row_tile, 128) targets in {0,1}

    s = (2.0 * t - 1.0) * x                   # logit of the target class
    loss = _stable_focal_terms(s, t, approx_recip=True)

    row_tile = loss.shape[0]

    def _accumulate(v):
        if row_tile == out_rows:
            red = v
        else:
            # Contiguous split of the sublane-major axis -> pure VPU adds.
            red = v.reshape(-1, out_rows, _LANE).sum(axis=0)
        o_ref[...] += red

    needs_edge_mask = edge_valid_rows != row_tile   # static python flag

    if not needs_edge_mask and not has_overhang:
        _accumulate(loss)                            # fast path: all blocks full
    else:
        is_edge = blk == (n_blocks - 1)
        if needs_edge_mask:
            @pl.when(is_edge)
            def _edge():
                # Pallas-padded rows past the array end hold undefined data;
                # jnp.where *selects* (no multiply), so any NaN/Inf there
                # cannot leak into the accumulated slab.
                row_ids = jax.lax.broadcasted_iota(jnp.int32, loss.shape, 0)
                _accumulate(jnp.where(row_ids < edge_valid_rows, loss, 0.0))
            interior = jnp.logical_and(blk < n_blocks, jnp.logical_not(is_edge))
        else:
            interior = blk < n_blocks                # skip only the overhang step
        @pl.when(interior)
        def _interior():
            _accumulate(loss)


def _num_tensorcores_per_chip() -> int:
    # v7x exposes two TensorCores behind one device; v5e/v6e have one.
    try:
        kind = jax.devices()[0].device_kind.lower()
    except Exception:
        return 1
    return 2 if "v7" in kind else 1


def focal_loss1(inputs, targets):
    """Pallas TPU implementation of Covidet focal_loss1.forward (mean loss)."""
    x_flat = inputs.reshape(-1)          # native dtype (f32 or bf16): no astype
    t_flat = targets.reshape(-1)         # native dtype (bool/int8/int32/...)
    n = x_flat.shape[0]
    full_rows, rem = divmod(n, _LANE)

    total = jnp.zeros((), jnp.float32)

    if full_rows > 0:
        body = full_rows * _LANE
        # For typical NCHW tensors n % 128 == 0, so this is a pure-metadata
        # reshape; the prefix slice only materializes when there is a tail.
        x2 = (x_flat if rem == 0 else x_flat[:body]).reshape(full_rows, _LANE)
        t2 = (t_flat if rem == 0 else t_flat[:body]).reshape(full_rows, _LANE)

        row_tile = _MAX_ROW_TILE if full_rows >= _MAX_ROW_TILE else full_rows
        out_rows = _OUT_ROWS if row_tile % _OUT_ROWS == 0 else row_tile

        n_blocks = -(-full_rows // row_tile)
        splits = min(_num_tensorcores_per_chip(), n_blocks)   # 1 on v5e/v6e
        bpc = -(-n_blocks // splits)                           # blocks per core
        has_overhang = splits * bpc != n_blocks
        edge_valid_rows = full_rows - (n_blocks - 1) * row_tile

        kernel = functools.partial(
            _focal_kernel, out_rows=out_rows, n_blocks=n_blocks, bpc=bpc,
            edge_valid_rows=edge_valid_rows, has_overhang=has_overhang)

        # Clamp so the (at most one) overhang step re-reads the last block
        # instead of DMA-ing out of bounds; its accumulation is pl.when-skipped.
        in_map = lambda c, j: (jnp.minimum(c * bpc + j, n_blocks - 1), 0)

        partial_sums = pl.pallas_call(
            kernel,
            out_shape=jax.ShapeDtypeStruct((splits * out_rows, _LANE),
                                           jnp.float32),
            grid_spec=pltpu.PrefetchScalarGridSpec(
                num_scalar_prefetch=0,
                grid=(splits, bpc),
                in_specs=[
                    pl.BlockSpec((row_tile, _LANE), in_map),   # logits
                    pl.BlockSpec((row_tile, _LANE), in_map),   # targets
                ],
                # Small resident lane-dense accumulator per core.
                out_specs=pl.BlockSpec((out_rows, _LANE), lambda c, j: (c, 0)),
            ),
            compiler_params=pltpu.CompilerParams(
                dimension_semantics=("parallel", "arbitrary"),
            ),
            cost_estimate=pl.CostEstimate(
                flops=14 * body,
                transcendentals=3 * body,
                bytes_accessed=(body * (x2.dtype.itemsize + t2.dtype.itemsize)
                                + splits * out_rows * _LANE * 4),
            ),
        )(x2, t2)

        total = total + jnp.sum(partial_sums)

    if rem:
        # <=127 trailing elements: cheaper in plain JAX than padding the whole
        # tensor just to round the kernel input up to a full 128-lane row.
        body = full_rows * _LANE
        xt = x_flat[body:].astype(jnp.float32)
        tt = t_flat[body:].astype(jnp.float32)
        st = (2.0 * tt - 1.0) * xt
        total = total + jnp.sum(_stable_focal_terms(st, tt, approx_recip=False))

    return total / jnp.float32(n)


def _reference(inputs, targets):
    # Pure-JAX mirror of the PyTorch forward (sigmoid -> pick pt -> focal).
    p = jax.nn.sigmoid(inputs.reshape(-1).astype(jnp.float32))
    t = targets.reshape(-1).astype(jnp.int32)
    pt = jnp.where(t == 1, p, 1.0 - p)
    alpha = jnp.where(t == 1, 0.8, 0.2)
    loss = -alpha * (1.0 - pt) ** 2 * jnp.log(pt)
    return jnp.mean(loss)


if __name__ == "__main__":
    key = jax.random.PRNGKey(0)
    kx, kt = jax.random.split(key)

    # Small NCHW logits and 0/1 targets of the same shape.
    inputs = jax.random.normal(kx, (2, 4, 16, 16), dtype=jnp.float32)
    targets = jax.random.bernoulli(kt, p=0.5, shape=(2, 4, 16, 16)).astype(jnp.int32)

    loss = jax.block_until_ready(focal_loss1(inputs, targets))
    ref = jax.block_until_ready(_reference(inputs, targets))

    # approx reciprocal contributes ~1e-3-level relative error; use
    # approx_recip=False in the kernel if bit-tight matching is ever required.
    assert jnp.allclose(loss, ref, rtol=1e-2, atol=1e-6), (loss, ref)

    print("KERNEL_OK")
</pallas_src>

<mosaic_0001>
module attributes {stable_mosaic.version = 11 : i64} {
  func.func @_focal_kernel(%arg0: i32, %arg1: i32, %arg2: memref<16x128xf32, #tpu.memory_space<vmem>>, %arg3: memref<16x128xi32, #tpu.memory_space<vmem>>, %arg4: memref<16x128xf32, #tpu.memory_space<vmem>>) attributes {dimension_semantics = [#tpu.dimension_semantics<parallel>, #tpu.dimension_semantics<arbitrary>], iteration_bounds = array<i64: 1, 1>, scalar_prefetch = 0 : i64, scratch_operands = 0 : i64, tpu.core_type = #tpu.core_type<tc>, window_params = [{transform_indices = @transform_0, window_bounds = array<i64: 16, 128>}, {transform_indices = @transform_1, window_bounds = array<i64: 16, 128>}, {transform_indices = @transform_2, window_bounds = array<i64: 16, 128>}]} {
    %c0_i32 = arith.constant 0 : i32
    %0 = arith.cmpi eq, %arg1, %c0_i32 : i32
    %1 = arith.extui %0 : i1 to i32
    %c0_i32_0 = arith.constant 0 : i32
    %2 = arith.cmpi ne, %1, %c0_i32_0 : i32
    scf.if %2 {
      %cst_17 = arith.constant 0.000000e+00 : f32
      %39 = vector.broadcast %cst_17 : f32 to vector<16x128xf32>
      %c0_18 = arith.constant 0 : index
      %c0_19 = arith.constant 0 : index
      %40 = vector.load %arg4[%c0_18, %c0_19] : memref<16x128xf32, #tpu.memory_space<vmem>>, vector<16x128xf32>
      tpu.vector_store %arg4[%c0_18, %c0_19], %39 {strides = array<i32>} : memref<16x128xf32, #tpu.memory_space<vmem>>, vector<16x128xf32>,
    } else {
    }
    %c0 = arith.constant 0 : index
    %c0_1 = arith.constant 0 : index
    %3 = vector.load %arg2[%c0, %c0_1] : memref<16x128xf32, #tpu.memory_space<vmem>>, vector<16x128xf32>
    %c0_2 = arith.constant 0 : index
    %c0_3 = arith.constant 0 : index
    %4 = vector.load %arg3[%c0_2, %c0_3] : memref<16x128xi32, #tpu.memory_space<vmem>>, vector<16x128xi32>
    %5 = arith.sitofp %4 : vector<16x128xi32> to vector<16x128xf32>
    %cst = arith.constant 2.000000e+00 : f32
    %6 = vector.broadcast %cst : f32 to vector<16x128xf32>
    %7 = arith.mulf %6, %5 : vector<16x128xf32>
    %cst_4 = arith.constant 1.000000e+00 : f32
    %8 = vector.broadcast %cst_4 : f32 to vector<16x128xf32>
    %9 = arith.subf %7, %8 : vector<16x128xf32>
    %10 = arith.mulf %9, %3 : vector<16x128xf32>
    %11 = math.absf %10 : vector<16x128xf32>
    %cst_5 = arith.constant 0.000000e+00 : f32
    %12 = vector.broadcast %cst_5 : f32 to vector<16x128xf32>
    %13 = arith.subf %12, %11 : vector<16x128xf32>
    %14 = math.exp %13 : vector<16x128xf32>
    %cst_6 = arith.constant 1.000000e+00 : f32
    %15 = vector.broadcast %cst_6 : f32 to vector<16x128xf32>
    %16 = arith.addf %15, %14 : vector<16x128xf32>
    %cst_7 = arith.constant 0.000000e+00 : f32
    %17 = vector.broadcast %cst_7 : f32 to vector<16x128xf32>
    %18 = arith.subf %17, %10 : vector<16x128xf32>
    %cst_8 = arith.constant 0.000000e+00 : f32
    %19 = vector.broadcast %cst_8 : f32 to vector<16x128xf32>
    %20 = arith.maximumf %18, %19 : vector<16x128xf32>
    %21 = math.log %16 : vector<16x128xf32>
    %22 = arith.addf %20, %21 : vector<16x128xf32>
    %23 = tpu.reciprocal %16 {approx = true} : vector<16x128xf32> -> vector<16x128xf32>
    %cst_9 = arith.constant 0.000000e+00 : f32
    %24 = vector.broadcast %cst_9 : f32 to vector<16x128xf32>
    %25 = arith.cmpf oge, %10, %24 : vector<16x128xf32>
    %cst_10 = arith.constant 1.000000e+00 : f32
    %26 = vector.broadcast %cst_10 : f32 to vector<16x128xf32>
    %27 = arith.select %25, %14, %26 : vector<16x128xi1>, vector<16x128xf32>
    %28 = arith.mulf %27, %23 : vector<16x128xf32>
    %cst_11 = arith.constant 6.000000e-01 : f32
    %29 = vector.broadcast %cst_11 : f32 to vector<16x128xf32>
    %30 = arith.mulf %29, %5 : vector<16x128xf32>
    %cst_12 = arith.constant 2.000000e-01 : f32
    %31 = vector.broadcast %cst_12 : f32 to vector<16x128xf32>
    %32 = arith.addf %31, %30 : vector<16x128xf32>
    %33 = arith.mulf %28, %28 : vector<16x128xf32>
    %34 = arith.mulf %32, %33 : vector<16x128xf32>
    %35 = arith.mulf %34, %22 : vector<16x128xf32>
    %c0_13 = arith.constant 0 : index
    %c0_14 = arith.constant 0 : index
    %36 = vector.load %arg4[%c0_13, %c0_14] : memref<16x128xf32, #tpu.memory_space<vmem>>, vector<16x128xf32>
    %37 = arith.addf %36, %35 : vector<16x128xf32>
    %c0_15 = arith.constant 0 : index
    %c0_16 = arith.constant 0 : index
    %38 = vector.load %arg4[%c0_15, %c0_16] : memref<16x128xf32, #tpu.memory_space<vmem>>, vector<16x128xf32>
    tpu.vector_store %arg4[%c0_15, %c0_16], %37 {strides = array<i32>} : memref<16x128xf32, #tpu.memory_space<vmem>>, vector<16x128xf32>,
    return
  }
  func.func @transform_0(%arg0: i32, %arg1: i32) -> (i32, i32) {
    %c1_i32 = arith.constant 1 : i32
    %0 = arith.muli %arg0, %c1_i32 : i32
    %1 = arith.addi %0, %arg1 : i32
    %c0_i32 = arith.constant 0 : i32
    %2 = arith.minsi %1, %c0_i32 : i32
    %c0_i32_0 = arith.constant 0 : i32
    %c0_i32_1 = arith.constant 0 : i32
    return %2, %c0_i32_0 : i32, i32
  }
  func.func @transform_1(%arg0: i32, %arg1: i32) -> (i32, i32) {
    %c1_i32 = arith.constant 1 : i32
    %0 = arith.muli %arg0, %c1_i32 : i32
    %1 = arith.addi %0, %arg1 : i32
    %c0_i32 = arith.constant 0 : i32
    %2 = arith.minsi %1, %c0_i32 : i32
    %c0_i32_0 = arith.constant 0 : i32
    %c0_i32_1 = arith.constant 0 : i32
    return %2, %c0_i32_0 : i32, i32
  }
  func.func @transform_2(%arg0: i32, %arg1: i32) -> (i32, i32) {
    %c0_i32 = arith.constant 0 : i32
    %c0_i32_0 = arith.constant 0 : i32
    return %arg0, %c0_i32 : i32, i32
  }
}

</mosaic_0001>

<llo_original>
// kernel: tpu_custom_call.1
$region0: #{tpu_custom_call.1}
  #allocation0 [shape = 'u32[]', space=smem, size = 0x4, offset = 0x4, fixed_abs, tag = 'smem constant byte address 0x4 - core index']
  #allocation1 [shape = 'u32[144,128]{1,0:T(1,128)}', space=vmem, size = 0x12000, scoped, tag = 'internal scratch']
  %s0 = inlined_call_operand.hbm [shape: f32[16,128], index: 0, kind: input, shape index: {}]
  %s1 = inlined_call_operand.hbm [shape: s32[16,128], index: 1, kind: input, shape index: {}]
  %s2 = inlined_call_operand.hbm [shape: f32[16,128], index: 2, kind: output, shape index: {}]
  %s3 = sld [smem:[#allocation0]]
  $region30: #{tpu_custom_call.1} parent=0
    _
  %s5 = ssub.s32 1, %s3
  %s6 = scalar_select 0, %s5, %s3
  $region1: #{tpu_custom_call.1} parent=0
    #allocation2 [shape = 'u8[8192]{0}', space=vmem, size = 0x2000, scoped, tag = 'input window, operand 0, single buffered']
    #allocation3 [shape = 's32[1]{0}', space=sflag, size = 0x4, scoped, tag = 'scoped memory for tpu_custom_call.1']
    #allocation4 [shape = 's32[1]{0}', space=sflag, size = 0x4, scoped, tag = 'scoped memory for tpu_custom_call.1']
    #allocation5 [shape = 'u8[8192]{0}', space=vmem, size = 0x2000, scoped, tag = 'input window, operand 1, single buffered']
    #allocation6 [shape = 's32[1]{0}', space=sflag, size = 0x4, scoped, tag = 'scoped memory for tpu_custom_call.1']
    #allocation7 [shape = 'u8[8192]{0}', space=vmem, size = 0x2000, scoped, tag = 'output window, operand 0, single buffered']
    %7 = vsyncpa [#allocation3], 0
    %8 = vsyncpa [#allocation6], 0
    %9 = vsyncpa [#allocation4], 0
    // Predicated region
    $region2: #{tpu_custom_call.1} parent=1 // pred_check
      _
    $region3: #{tpu_custom_call.1} parent=1 // pred_check_branch
      %11 = sbr.rel (0) target = $region5
    $region4: #{tpu_custom_call.1} parent=1 // pred_region
      %s12 = sadd.s32 0, 0
      %p13 = scmp.lt.s32.totalorder %s12, 0
      %s14 = scalar_select %p13, %s12, 0
      %s15 = smul.u32 2, %s14
      %s17 = ssub.s32 256, 256
      %18 = vsyncadd [#allocation3], %s17
      %s19 = smul.addr %s15, 128
      %s20 = scalar_lea.hbm %s0, %s19
      %s21 = sshll.u32 [#allocation2], 4
      %s22 = int_to_ptr.vmem [resolvable:$true] %s21
      %27 = dma.hbm_to_vmem [thread:$0]  %s20, 256, %s22, [#allocation3], 128, 128, 8
    $region5: #{tpu_custom_call.1} parent=1 // pred_fallthru
      _
    // Predicated region
    $region6: #{tpu_custom_call.1} parent=1 // pred_check
      _
    $region7: #{tpu_custom_call.1} parent=1 // pred_check_branch
      %29 = sbr.rel (0) target = $region9
    $region8: #{tpu_custom_call.1} parent=1 // pred_region
      %s30 = sadd.s32 0, 0
      %p31 = scmp.lt.s32.totalorder %s30, 0
      %s32 = scalar_select %p31, %s30, 0
      %s33 = smul.u32 2, %s32
      %s35 = ssub.s32 256, 256
      %36 = vsyncadd [#allocation6], %s35
      %s37 = smul.addr %s33, 128
      %s38 = scalar_lea.hbm %s1, %s37
      %s39 = sshll.u32 [#allocation5], 4
      %s40 = int_to_ptr.vmem [resolvable:$true] %s39
      %45 = dma.hbm_to_vmem [thread:$0]  %s38, 256, %s40, [#allocation6], 128, 128, 8
    $region9: #{tpu_custom_call.1} parent=1 // pred_fallthru
      _
    // Predicated region
    $region10: #{tpu_custom_call.1} parent=1 // pred_check
      _
    $region11: #{tpu_custom_call.1} parent=1 // pred_check_branch
      %47 = sbr.rel (0) target = $region13
    $region12: #{tpu_custom_call.1} parent=1 // pred_region
      %48 = dma.done [#allocation3], 256
    $region13: #{tpu_custom_call.1} parent=1 // pred_fallthru
      _
    // Predicated region
    $region14: #{tpu_custom_call.1} parent=1 // pred_check
      _
    $region15: #{tpu_custom_call.1} parent=1 // pred_check_branch
      %50 = sbr.rel (0) target = $region17
    $region16: #{tpu_custom_call.1} parent=1 // pred_region
      %51 = dma.done [#allocation6], 256
    $region17: #{tpu_custom_call.1} parent=1 // pred_fallthru
      _
    %s52 = sadd.s32 0, 0
    %p53 = scmp.lt.s32.totalorder %s52, 0
    %s54 = scalar_select %p53, %s52, 0
    %s55 = smul.u32 2, %s54
    %s56 = sadd.s32 0, 0
    %p57 = scmp.lt.s32.totalorder %s56, 0
    %s58 = scalar_select %p57, %s56, 0
    %s59 = smul.u32 2, %s58
    %p60 = scmp.eq.s32.totalorder 0, 0
    // Predicated region
    $region18: #{tpu_custom_call.1} parent=1 // pred_check
      %p61 = pneg %p60
    $region19: #{tpu_custom_call.1} parent=1 // pred_check_branch
      %63 = sbr.rel (%p61) target = $region21
    $region20: #{tpu_custom_call.1} parent=1 // pred_region
      %64 = vst [vmem:[#allocation7] sm:$0xff] 0.0
      %65 = vst [vmem:[#allocation7 + $0x8] sm:$0xff] 0.0
    $region21: #{tpu_custom_call.1} parent=1 // pred_fallthru
      _
    %v66 = vld [vmem:[#allocation2] sm:$0xff]
    %v67 = vld [vmem:[#allocation2 + $0x8] sm:$0xff]
    %v68 = vld [vmem:[#allocation5] sm:$0xff]
    %v69 = vld [vmem:[#allocation5 + $0x8] sm:$0xff]
    %v70 = vcvt.s32.f32 %v68
    %v71 = vcvt.s32.f32 %v69
    %v72 = vmul.f32 %v70, 2.0
    %v73 = vmul.f32 %v71, 2.0
    %v74 = vsub.f32 %v72, 1.0
    %v75 = vsub.f32 %v73, 1.0
    %v76 = vmul.f32 %v74, %v66
    %v77 = vmul.f32 %v75, %v67
    %v78 = vand.u32 2147483647, %v76
    %v79 = vand.u32 2147483647, %v77
    %v80 = vsub.f32 0.0, %v78
    %v81 = vsub.f32 0.0, %v79
    %v82 = vmul.f32 %v80, 1.442695
    %v83 = vpow.pop %v82
    %v84 = vmul.f32 %v81, 1.442695
    %v85 = vpow.pop %v84
    %v86 = vadd.f32 %v83, 1.0
    %v87 = vadd.f32 %v85, 1.0
    %v88 = vsub.f32 0.0, %v76
    %v89 = vsub.f32 0.0, %v77
    %v90 = vmax.f32 %v88, 0.0
    %v91 = vmax.f32 %v89, 0.0
    %v92 = vlog2.pop %v86
    %v93 = vmul.f32 %v92, 0.6931472
    %v94 = vlog2.pop %v87
    %v95 = vmul.f32 %v94, 0.6931472
    %v96 = vadd.f32 %v90, %v93
    %v97 = vadd.f32 %v91, %v95
    %v98 = vrcp.pop %v86
    %v99 = vrcp.pop %v87
    %vm100 = vcmp.ge.f32.partialorder %v76, 0.0
    %vm101 = vcmp.ge.f32.partialorder %v77, 0.0
    %v102 = vsel %vm100, %v83, 1.0
    %v103 = vsel %vm101, %v85, 1.0
    %v104 = vmul.f32 %v102, %v98
    %v105 = vmul.f32 %v103, %v99
    %v106 = vmul.f32 %v70, 0.6
    %v107 = vmul.f32 %v71, 0.6
    %v108 = vadd.f32 %v106, 0.2
    %v109 = vadd.f32 %v107, 0.2
    %v110 = vmul.f32 %v104, %v104
    %v111 = vmul.f32 %v105, %v105
    %v112 = vmul.f32 %v108, %v110
    %v113 = vmul.f32 %v109, %v111
    %v114 = vmul.f32 %v112, %v96
    %v115 = vmul.f32 %v113, %v97
    %v116 = vld [vmem:[#allocation7] sm:$0xff]
    %v117 = vld [vmem:[#allocation7 + $0x8] sm:$0xff]
    %v118 = vadd.f32 %v116, %v114
    %v119 = vadd.f32 %v117, %v115
    %120 = vst [vmem:[#allocation7] sm:$0xff] %v118
    %121 = vst [vmem:[#allocation7 + $0x8] sm:$0xff] %v119
    // Predicated region
    $region22: #{tpu_custom_call.1} parent=1 // pred_check
      _
    $region23: #{tpu_custom_call.1} parent=1 // pred_check_branch
      %123 = sbr.rel (0) target = $region25
    $region24: #{tpu_custom_call.1} parent=1 // pred_region
      %s125 = ssub.s32 256, 256
      %126 = vsyncadd [#allocation4], %s125
      %s127 = sshll.u32 [#allocation7], 4
      %s128 = int_to_ptr.vmem [resolvable:$true] %s127
      %133 = dma.vmem_to_hbm [thread:$0]  %s128, 256, %s2, [#allocation4], 128, 128, 8
    $region25: #{tpu_custom_call.1} parent=1 // pred_fallthru
      _
    // Predicated region
    $region26: #{tpu_custom_call.1} parent=1 // pred_check
      _
    $region27: #{tpu_custom_call.1} parent=1 // pred_check_branch
      %135 = sbr.rel (0) target = $region29
    $region28: #{tpu_custom_call.1} parent=1 // pred_region
      %136 = dma.done [#allocation4], 256
    $region29: #{tpu_custom_call.1} parent=1 // pred_fallthru
      _
    %137 = vsyncpa [#allocation3], 1
    %138 = vsyncpa [#allocation6], 1
    %139 = vsyncpa [#allocation4], 1

</llo_original>
